<compile_context>
chip_gen: v5e
topology: v5e:2x2
jax: 0.10.0
libtpu: 0.0.40
codegen_flags: <defaults>
</compile_context>

<pallas_src>
import functools

import jax
import jax.numpy as jnp
from jax.experimental import pallas as pl
from jax.experimental.pallas import tpu as pltpu

IN_DIM = 3
HIDDEN = 64
OUT_DIM = 2


def _mlp_kernel(xt_ref, w1_ref, b1_ref, w2_ref, b2_ref, o_ref):
    # xt_ref: (3, TN)    batch tile, batch on lanes
    # w1_ref: (64, 3)    fc1 weight (PyTorch [out, in] layout), resident
    # b1_ref: (64, 1)    fc1 bias
    # w2_ref: (2, 64)    fc2 weight ([out, in]), resident
    # b2_ref: (2, 1)     fc2 bias
    # o_ref : (2, TN)    output tile (lane-dense)
    xt = xt_ref[...]
    w1 = w1_ref[...]
    # fc1: K=3 would be a degenerate MXU matmul -> 3 broadcast multiply-adds on the VPU.
    h = (w1[:, 0:1] * xt[0:1, :]
         + w1[:, 1:2] * xt[1:2, :]
         + w1[:, 2:3] * xt[2:3, :]
         + b1_ref[...])
    h = jnp.maximum(h, 0.0)  # ReLU
    # fc2: (2,64) @ (64,TN) -> (2,TN); K=64 with lane-dense N=TN (good MXU shape).
    y = jnp.dot(w2_ref[...], h, preferred_element_type=jnp.float32) + b2_ref[...]
    o_ref[...] = y.astype(o_ref.dtype)


@functools.partial(jax.jit, static_argnames=("tn",))
def interpolator_forward(x, w1, b1, w2, b2, *, tn=2048):
    """x: (N, 3) f32 -> (N, 2) f32.

    Weights in PyTorch layout: w1 (64, 3), b1 (64,), w2 (2, 64), b2 (2,).
    tn: batch tile (rows per grid step); multiple of 128.
    """
    n = x.shape[0]

    # Pad the batch to a lane-friendly size instead of asserting divisibility.
    n_128 = max(128, ((n + 127) // 128) * 128)
    tile = min(tn, n_128)                       # tile is a multiple of 128
    n_pad = ((n_128 + tile - 1) // tile) * tile
    grid = (n_pad // tile,)

    xt = jnp.pad(x.T, ((0, 0), (0, n_pad - n)))  # (3, n_pad) — layout plumbing
    b1c = b1.reshape(HIDDEN, 1)
    b2c = b2.reshape(OUT_DIM, 1)

    out_t = pl.pallas_call(
        _mlp_kernel,
        out_shape=jax.ShapeDtypeStruct((OUT_DIM, n_pad), jnp.float32),
        grid_spec=pl.GridSpec(
            grid=grid,
            in_specs=[
                pl.BlockSpec((IN_DIM, tile), lambda i: (0, i)),      # x tile (streamed)
                pl.BlockSpec((HIDDEN, IN_DIM), lambda i: (0, 0)),    # W1 (resident)
                pl.BlockSpec((HIDDEN, 1), lambda i: (0, 0)),         # b1
                pl.BlockSpec((OUT_DIM, HIDDEN), lambda i: (0, 0)),   # W2
                pl.BlockSpec((OUT_DIM, 1), lambda i: (0, 0)),        # b2
            ],
            out_specs=pl.BlockSpec((OUT_DIM, tile), lambda i: (0, i)),
        ),
        compiler_params=pltpu.CompilerParams(
            dimension_semantics=("parallel",),   # shards grid across TCs on v7x
        ),
    )(xt, w1, b1c, w2, b2c)

    return out_t[:, :n].T                        # (N, 2)


def init_params(key):
    """Deterministic init mimicking nn.Linear default (U[-1/sqrt(fan_in), +]).

    Stored in PyTorch [out, in] layout (the kernel uses them as W @ x)."""
    k1, k2, k3, k4 = jax.random.split(key, 4)
    bound1 = 1.0 / jnp.sqrt(IN_DIM)
    bound2 = 1.0 / jnp.sqrt(HIDDEN)
    w1 = jax.random.uniform(k1, (HIDDEN, IN_DIM), jnp.float32, -bound1, bound1)
    b1 = jax.random.uniform(k2, (HIDDEN,), jnp.float32, -bound1, bound1)
    w2 = jax.random.uniform(k3, (OUT_DIM, HIDDEN), jnp.float32, -bound2, bound2)
    b2 = jax.random.uniform(k4, (OUT_DIM,), jnp.float32, -bound2, bound2)
    return w1, b1, w2, b2


def _reference(x, w1, b1, w2, b2):
    return jnp.maximum(x @ w1.T + b1, 0.0) @ w2.T + b2


if __name__ == "__main__":
    key = jax.random.PRNGKey(0)
    k_x, k_x2, k_p = jax.random.split(key, 3)
    w1, b1, w2, b2 = init_params(k_p)

    # Small demo batch (3-parameter vectors, matching the PyTorch module).
    N = 16
    x = jax.random.normal(k_x, (N, IN_DIM), dtype=jnp.float32)
    out = jax.block_until_ready(interpolator_forward(x, w1, b1, w2, b2))
    ref = _reference(x, w1, b1, w2, b2)
    assert out.shape == (N, OUT_DIM), out.shape
    assert jnp.allclose(out, ref, atol=1e-5, rtol=1e-5), "mismatch vs reference (N=16)"

    # Exercise multi-step grid + non-divisible batch padding path.
    N2 = 300
    x2 = jax.random.normal(k_x2, (N2, IN_DIM), dtype=jnp.float32)
    out2 = jax.block_until_ready(interpolator_forward(x2, w1, b1, w2, b2, tn=128))
    ref2 = _reference(x2, w1, b1, w2, b2)
    assert out2.shape == (N2, OUT_DIM), out2.shape
    assert jnp.allclose(out2, ref2, atol=1e-5, rtol=1e-5), "mismatch vs reference (N=300)"

    print("KERNEL_OK")
</pallas_src>

<mosaic_0001>
module attributes {stable_mosaic.version = 11 : i64} {
  func.func @_mlp_kernel(%arg0: i32, %arg1: memref<3x128xf32, #tpu.memory_space<vmem>>, %arg2: memref<64x3xf32, #tpu.memory_space<vmem>>, %arg3: memref<64x1xf32, #tpu.memory_space<vmem>>, %arg4: memref<2x64xf32, #tpu.memory_space<vmem>>, %arg5: memref<2x1xf32, #tpu.memory_space<vmem>>, %arg6: memref<2x128xf32, #tpu.memory_space<vmem>>) attributes {dimension_semantics = [#tpu.dimension_semantics<parallel>], iteration_bounds = array<i64: 1>, scalar_prefetch = 0 : i64, scratch_operands = 0 : i64, tpu.core_type = #tpu.core_type<tc>, window_params = [{transform_indices = @transform_0, window_bounds = array<i64: 3, 128>}, {pipeline_mode = #tpu.pipeline_mode<synchronous>, transform_indices = @transform_1, window_bounds = array<i64: 64, 3>}, {pipeline_mode = #tpu.pipeline_mode<synchronous>, transform_indices = @transform_2, window_bounds = array<i64: 64, 1>}, {pipeline_mode = #tpu.pipeline_mode<synchronous>, transform_indices = @transform_3, window_bounds = array<i64: 2, 64>}, {pipeline_mode = #tpu.pipeline_mode<synchronous>, transform_indices = @transform_4, window_bounds = array<i64: 2, 1>}, {transform_indices = @transform_5, window_bounds = array<i64: 2, 128>}]} {
    %c0 = arith.constant 0 : index
    %c0_0 = arith.constant 0 : index
    %0 = vector.load %arg1[%c0, %c0_0] : memref<3x128xf32, #tpu.memory_space<vmem>>, vector<3x128xf32>
    %c0_1 = arith.constant 0 : index
    %c0_2 = arith.constant 0 : index
    %1 = vector.load %arg2[%c0_1, %c0_2] : memref<64x3xf32, #tpu.memory_space<vmem>>, vector<64x3xf32>
    %2 = vector.extract_strided_slice %1 {offsets = [0, 0], sizes = [64, 1], strides = [1, 1]} : vector<64x3xf32> to vector<64x1xf32>
    %3 = vector.extract_strided_slice %0 {offsets = [0, 0], sizes = [1, 128], strides = [1, 1]} : vector<3x128xf32> to vector<1x128xf32>
    %4 = vector.broadcast %2 : vector<64x1xf32> to vector<64x128xf32>
    %5 = vector.broadcast %3 : vector<1x128xf32> to vector<64x128xf32>
    %6 = arith.mulf %4, %5 : vector<64x128xf32>
    %7 = vector.extract_strided_slice %1 {offsets = [0, 1], sizes = [64, 1], strides = [1, 1]} : vector<64x3xf32> to vector<64x1xf32>
    %8 = vector.extract_strided_slice %0 {offsets = [1, 0], sizes = [1, 128], strides = [1, 1]} : vector<3x128xf32> to vector<1x128xf32>
    %9 = vector.broadcast %7 : vector<64x1xf32> to vector<64x128xf32>
    %10 = vector.broadcast %8 : vector<1x128xf32> to vector<64x128xf32>
    %11 = arith.mulf %9, %10 : vector<64x128xf32>
    %12 = arith.addf %6, %11 : vector<64x128xf32>
    %13 = vector.extract_strided_slice %1 {offsets = [0, 2], sizes = [64, 1], strides = [1, 1]} : vector<64x3xf32> to vector<64x1xf32>
    %14 = vector.extract_strided_slice %0 {offsets = [2, 0], sizes = [1, 128], strides = [1, 1]} : vector<3x128xf32> to vector<1x128xf32>
    %15 = vector.broadcast %13 : vector<64x1xf32> to vector<64x128xf32>
    %16 = vector.broadcast %14 : vector<1x128xf32> to vector<64x128xf32>
    %17 = arith.mulf %15, %16 : vector<64x128xf32>
    %18 = arith.addf %12, %17 : vector<64x128xf32>
    %c0_3 = arith.constant 0 : index
    %c0_4 = arith.constant 0 : index
    %19 = vector.load %arg3[%c0_3, %c0_4] : memref<64x1xf32, #tpu.memory_space<vmem>>, vector<64x1xf32>
    %20 = vector.broadcast %19 : vector<64x1xf32> to vector<64x128xf32>
    %21 = arith.addf %18, %20 : vector<64x128xf32>
    %cst = arith.constant 0.000000e+00 : f32
    %22 = vector.broadcast %cst : f32 to vector<64x128xf32>
    %23 = arith.maximumf %21, %22 : vector<64x128xf32>
    %c0_5 = arith.constant 0 : index
    %c0_6 = arith.constant 0 : index
    %24 = vector.load %arg4[%c0_5, %c0_6] : memref<2x64xf32, #tpu.memory_space<vmem>>, vector<2x64xf32>
    %cst_7 = arith.constant dense<0.000000e+00> : vector<2x128xf32>
    %25 = tpu.matmul %24, %23, %cst_7 {dimension_numbers = #tpu.dot_dimension_numbers<[1], [0], [0], [1], [0, 0, 1, 1], [], []>} : vector<2x64xf32>, vector<64x128xf32>, vector<2x128xf32> -> vector<2x128xf32>
    %c0_8 = arith.constant 0 : index
    %c0_9 = arith.constant 0 : index
    %26 = vector.load %arg5[%c0_8, %c0_9] : memref<2x1xf32, #tpu.memory_space<vmem>>, vector<2x1xf32>
    %27 = vector.broadcast %26 : vector<2x1xf32> to vector<2x128xf32>
    %28 = arith.addf %25, %27 : vector<2x128xf32>
    %c0_10 = arith.constant 0 : index
    %c0_11 = arith.constant 0 : index
    %29 = vector.load %arg6[%c0_10, %c0_11] : memref<2x128xf32, #tpu.memory_space<vmem>>, vector<2x128xf32>
    tpu.vector_store %arg6[%c0_10, %c0_11], %28 {strides = array<i32>} : memref<2x128xf32, #tpu.memory_space<vmem>>, vector<2x128xf32>,
    return
  }
  func.func @transform_0(%arg0: i32) -> (i32, i32) {
    %c0_i32 = arith.constant 0 : i32
    %c0_i32_0 = arith.constant 0 : i32
    return %c0_i32, %arg0 : i32, i32
  }
  func.func @transform_1(%arg0: i32) -> (i32, i32) {
    %c0_i32 = arith.constant 0 : i32
    %c0_i32_0 = arith.constant 0 : i32
    %c0_i32_1 = arith.constant 0 : i32
    return %c0_i32, %c0_i32_0 : i32, i32
  }
  func.func @transform_2(%arg0: i32) -> (i32, i32) {
    %c0_i32 = arith.constant 0 : i32
    %c0_i32_0 = arith.constant 0 : i32
    %c0_i32_1 = arith.constant 0 : i32
    return %c0_i32, %c0_i32_0 : i32, i32
  }
  func.func @transform_3(%arg0: i32) -> (i32, i32) {
    %c0_i32 = arith.constant 0 : i32
    %c0_i32_0 = arith.constant 0 : i32
    %c0_i32_1 = arith.constant 0 : i32
    return %c0_i32, %c0_i32_0 : i32, i32
  }
  func.func @transform_4(%arg0: i32) -> (i32, i32) {
    %c0_i32 = arith.constant 0 : i32
    %c0_i32_0 = arith.constant 0 : i32
    %c0_i32_1 = arith.constant 0 : i32
    return %c0_i32, %c0_i32_0 : i32, i32
  }
  func.func @transform_5(%arg0: i32) -> (i32, i32) {
    %c0_i32 = arith.constant 0 : i32
    %c0_i32_0 = arith.constant 0 : i32
    return %c0_i32, %arg0 : i32, i32
  }
}

</mosaic_0001>

<llo_original>
// kernel: interpolator_forward.1
$region0: #{interpolator_forward.1}
  #allocation0 [shape = 'u32[]', space=smem, size = 0x4, offset = 0x4, fixed_abs, tag = 'smem constant byte address 0x4 - core index']
  #allocation1 [shape = 'u32[72,128]{1,0:T(1,128)}', space=vmem, size = 0x9000, scoped, tag = 'internal scratch']
  %s0 = inlined_call_operand.vmem [shape: f32[3,128], index: 0, kind: input, shape index: {}]
  %s1 = inlined_call_operand.vmem [shape: f32[64,3], index: 1, kind: input, shape index: {}]
  %s2 = inlined_call_operand.vmem [shape: f32[64,1], index: 2, kind: input, shape index: {}]
  %s3 = inlined_call_operand.vmem [shape: f32[2,64], index: 3, kind: input, shape index: {}]
  %s4 = inlined_call_operand.vmem [shape: f32[2,1], index: 4, kind: input, shape index: {}]
  %s5 = inlined_call_operand.vmem [shape: f32[2,128], index: 5, kind: output, shape index: {}]
  %s6 = sld [smem:[#allocation0]]
  $region30: #{interpolator_forward.1} parent=0
    _
  %s8 = ssub.s32 1, %s6
  %s9 = scalar_select 0, %s8, %s6
  // Predicated region
  $region2: #{interpolator_forward.1} parent=0 // pred_check
    _
  $region3: #{interpolator_forward.1} parent=0 // pred_check_branch
    %11 = sbr.rel (0) target = $region5
  $region4: #{interpolator_forward.1} parent=0 // pred_region
    _
  $region5: #{interpolator_forward.1} parent=0 // pred_fallthru
    _
  // Predicated region
  $region6: #{interpolator_forward.1} parent=0 // pred_check
    _
  $region7: #{interpolator_forward.1} parent=0 // pred_check_branch
    %13 = sbr.rel (0) target = $region9
  $region8: #{interpolator_forward.1} parent=0 // pred_region
    _
  $region9: #{interpolator_forward.1} parent=0 // pred_fallthru
    _
  // Predicated region
  $region10: #{interpolator_forward.1} parent=0 // pred_check
    _
  $region11: #{interpolator_forward.1} parent=0 // pred_check_branch
    %15 = sbr.rel (0) target = $region13
  $region12: #{interpolator_forward.1} parent=0 // pred_region
    _
  $region13: #{interpolator_forward.1} parent=0 // pred_fallthru
    _
  // Predicated region
  $region14: #{interpolator_forward.1} parent=0 // pred_check
    _
  $region15: #{interpolator_forward.1} parent=0 // pred_check_branch
    %17 = sbr.rel (0) target = $region17
  $region16: #{interpolator_forward.1} parent=0 // pred_region
    _
  $region17: #{interpolator_forward.1} parent=0 // pred_fallthru
    _
  // Predicated region
  $region18: #{interpolator_forward.1} parent=0 // pred_check
    _
  $region19: #{interpolator_forward.1} parent=0 // pred_check_branch
    %19 = sbr.rel (0) target = $region21
  $region20: #{interpolator_forward.1} parent=0 // pred_region
    _
  $region21: #{interpolator_forward.1} parent=0 // pred_fallthru
    _
  %v20 = vld [vmem:[%s0] sm:$0x7]
  %v21 = vld [vmem:[%s1] sm:$0xff]
  %v22 = vld [vmem:[%s1 + $0x8] sm:$0xff]
  %v23 = vld [vmem:[%s1 + $0x10] sm:$0xff]
  %v24 = vld [vmem:[%s1 + $0x18] sm:$0xff]
  %v25 = vld [vmem:[%s1 + $0x20] sm:$0xff]
  %v26 = vld [vmem:[%s1 + $0x28] sm:$0xff]
  %v27 = vld [vmem:[%s1 + $0x30] sm:$0xff]
  %v28 = vld [vmem:[%s1 + $0x38] sm:$0xff]
  %30 = vset.pattern.permute.xlu0 0
  %31 = vperm.xlu0 %30, %v21
  %v32 = vpop.permute.xlu0 %31
  %35 = vset.pattern.permute.xlu0 0
  %36 = vperm.xlu0 %35, %v22
  %v37 = vpop.permute.xlu0 %36
  %40 = vset.pattern.permute.xlu0 0
  %41 = vperm.xlu0 %40, %v23
  %v42 = vpop.permute.xlu0 %41
  %45 = vset.pattern.permute.xlu0 0
  %46 = vperm.xlu0 %45, %v24
  %v47 = vpop.permute.xlu0 %46
  %50 = vset.pattern.permute.xlu0 0
  %51 = vperm.xlu0 %50, %v25
  %v52 = vpop.permute.xlu0 %51
  %55 = vset.pattern.permute.xlu0 0
  %56 = vperm.xlu0 %55, %v26
  %v57 = vpop.permute.xlu0 %56
  %60 = vset.pattern.permute.xlu0 0
  %61 = vperm.xlu0 %60, %v27
  %v62 = vpop.permute.xlu0 %61
  %65 = vset.pattern.permute.xlu0 0
  %66 = vperm.xlu0 %65, %v28
  %v67 = vpop.permute.xlu0 %66
  %v69 = vperm.slane %v20, 0
  %v70 = vmul.f32 %v32, %v69
  %v71 = vmul.f32 %v37, %v69
  %v72 = vmul.f32 %v42, %v69
  %v73 = vmul.f32 %v47, %v69
  %v74 = vmul.f32 %v52, %v69
  %v75 = vmul.f32 %v57, %v69
  %v76 = vmul.f32 %v62, %v69
  %v77 = vmul.f32 %v67, %v69
  %78 = vset.pattern.permute.xlu0 1
  %79 = vperm.xlu0 %78, %v21
  %v80 = vpop.permute.xlu0 %79
  %82 = vset.pattern.permute.xlu0 1
  %83 = vperm.xlu0 %82, %v22
  %v84 = vpop.permute.xlu0 %83
  %86 = vset.pattern.permute.xlu0 1
  %87 = vperm.xlu0 %86, %v23
  %v88 = vpop.permute.xlu0 %87
  %90 = vset.pattern.permute.xlu0 1
  %91 = vperm.xlu0 %90, %v24
  %v92 = vpop.permute.xlu0 %91
  %94 = vset.pattern.permute.xlu0 1
  %95 = vperm.xlu0 %94, %v25
  %v96 = vpop.permute.xlu0 %95
  %98 = vset.pattern.permute.xlu0 1
  %99 = vperm.xlu0 %98, %v26
  %v100 = vpop.permute.xlu0 %99
  %102 = vset.pattern.permute.xlu0 1
  %103 = vperm.xlu0 %102, %v27
  %v104 = vpop.permute.xlu0 %103
  %106 = vset.pattern.permute.xlu0 1
  %107 = vperm.xlu0 %106, %v28
  %v108 = vpop.permute.xlu0 %107
  %v110 = vperm.slane %v20, 1
  %v111 = vmul.f32 %v80, %v110
  %v112 = vmul.f32 %v84, %v110
  %v113 = vmul.f32 %v88, %v110
  %v114 = vmul.f32 %v92, %v110
  %v115 = vmul.f32 %v96, %v110
  %v116 = vmul.f32 %v100, %v110
  %v117 = vmul.f32 %v104, %v110
  %v118 = vmul.f32 %v108, %v110
  %v119 = vadd.f32 %v70, %v111
  %v120 = vadd.f32 %v71, %v112
  %v121 = vadd.f32 %v72, %v113
  %v122 = vadd.f32 %v73, %v114
  %v123 = vadd.f32 %v74, %v115
  %v124 = vadd.f32 %v75, %v116
  %v125 = vadd.f32 %v76, %v117
  %v126 = vadd.f32 %v77, %v118
  %127 = vset.pattern.permute.xlu0 2
  %128 = vperm.xlu0 %127, %v21
  %v129 = vpop.permute.xlu0 %128
  %131 = vset.pattern.permute.xlu0 2
  %132 = vperm.xlu0 %131, %v22
  %v133 = vpop.permute.xlu0 %132
  %135 = vset.pattern.permute.xlu0 2
  %136 = vperm.xlu0 %135, %v23
  %v137 = vpop.permute.xlu0 %136
  %139 = vset.pattern.permute.xlu0 2
  %140 = vperm.xlu0 %139, %v24
  %v141 = vpop.permute.xlu0 %140
  %143 = vset.pattern.permute.xlu0 2
  %144 = vperm.xlu0 %143, %v25
  %v145 = vpop.permute.xlu0 %144
  %147 = vset.pattern.permute.xlu0 2
  %148 = vperm.xlu0 %147, %v26
  %v149 = vpop.permute.xlu0 %148
  %151 = vset.pattern.permute.xlu0 2
  %152 = vperm.xlu0 %151, %v27
  %v153 = vpop.permute.xlu0 %152
  %155 = vset.pattern.permute.xlu0 2
  %156 = vperm.xlu0 %155, %v28
  %v157 = vpop.permute.xlu0 %156
  %v159 = vperm.slane %v20, 2
  %v160 = vmul.f32 %v129, %v159
  %v161 = vmul.f32 %v133, %v159
  %v162 = vmul.f32 %v137, %v159
  %v163 = vmul.f32 %v141, %v159
  %v164 = vmul.f32 %v145, %v159
  %v165 = vmul.f32 %v149, %v159
  %v166 = vmul.f32 %v153, %v159
  %v167 = vmul.f32 %v157, %v159
  %v168 = vadd.f32 %v119, %v160
  %v169 = vadd.f32 %v120, %v161
  %v170 = vadd.f32 %v121, %v162
  %v171 = vadd.f32 %v122, %v163
  %v172 = vadd.f32 %v123, %v164
  %v173 = vadd.f32 %v124, %v165
  %v174 = vadd.f32 %v125, %v166
  %v175 = vadd.f32 %v126, %v167
  %v176 = vld [vmem:[%s2] sm:$0xff]
  %v177 = vld [vmem:[%s2 + $0x8] sm:$0xff]
  %v178 = vld [vmem:[%s2 + $0x10] sm:$0xff]
  %v179 = vld [vmem:[%s2 + $0x18] sm:$0xff]
  %v180 = vld [vmem:[%s2 + $0x20] sm:$0xff]
  %v181 = vld [vmem:[%s2 + $0x28] sm:$0xff]
  %v182 = vld [vmem:[%s2 + $0x30] sm:$0xff]
  %v183 = vld [vmem:[%s2 + $0x38] sm:$0xff]
  %185 = vset.pattern.permute.xlu0 0
  %186 = vperm.xlu0 %185, %v176
  %v187 = vpop.permute.xlu0 %186
  %190 = vset.pattern.permute.xlu0 0
  %191 = vperm.xlu0 %190, %v177
  %v192 = vpop.permute.xlu0 %191
  %195 = vset.pattern.permute.xlu0 0
  %196 = vperm.xlu0 %195, %v178
  %v197 = vpop.permute.xlu0 %196
  %200 = vset.pattern.permute.xlu0 0
  %201 = vperm.xlu0 %200, %v179
  %v202 = vpop.permute.xlu0 %201
  %205 = vset.pattern.permute.xlu0 0
  %206 = vperm.xlu0 %205, %v180
  %v207 = vpop.permute.xlu0 %206
  %210 = vset.pattern.permute.xlu0 0
  %211 = vperm.xlu0 %210, %v181
  %v212 = vpop.permute.xlu0 %211
  %215 = vset.pattern.permute.xlu0 0
  %216 = vperm.xlu0 %215, %v182
  %v217 = vpop.permute.xlu0 %216
  %220 = vset.pattern.permute.xlu0 0
  %221 = vperm.xlu0 %220, %v183
  %v222 = vpop.permute.xlu0 %221
  %v224 = vadd.f32 %v168, %v187
  %v225 = vadd.f32 %v169, %v192
  %v226 = vadd.f32 %v170, %v197
  %v227 = vadd.f32 %v171, %v202
  %v228 = vadd.f32 %v172, %v207
  %v229 = vadd.f32 %v173, %v212
  %v230 = vadd.f32 %v174, %v217
  %v231 = vadd.f32 %v175, %v222
  %v232 = vmax.f32 %v224, 0.0
  %v233 = vmax.f32 %v225, 0.0
  %v234 = vmax.f32 %v226, 0.0
  %v235 = vmax.f32 %v227, 0.0
  %v236 = vmax.f32 %v228, 0.0
  %v237 = vmax.f32 %v229, 0.0
  %v238 = vmax.f32 %v230, 0.0
  %v239 = vmax.f32 %v231, 0.0
  %v240 = vld [vmem:[%s3] sm:$0x3]
  %v241 = vld [vmem:[%s4] sm:$0x3]
  %243 = vset.pattern.permute.xlu0 0
  %244 = vperm.xlu0 %243, %v241
  %v245 = vpop.permute.xlu0 %244
  %vm247 = vcmask 523264
  %v249 = vsel %vm247, %v240, 0
  %251 = vmatpush.msra.mxu0 0.0
  %252 = vmatpush.msra.mxu0 0.0
  %253 = vmatpush.msra.mxu0 0.0
  %254 = vmatpush.msra.mxu0 0.0
  %255 = vmatpush.msra.mxu0 0.0
  %256 = vmatpush.msra.mxu0 0.0
  %257 = vmatpush.msra.mxu0 0.0
  %258 = vmatpush.msra.mxu0 0.0
  %259 = vmatpush.msra.mxu0 %v239
  %260 = vmatpush.msra.mxu0 %v238
  %261 = vmatpush.msra.mxu0 %v237
  %262 = vmatpush.msra.mxu0 %v236
  %263 = vmatpush.msra.mxu0 %v235
  %264 = vmatpush.msra.mxu0 %v234
  %265 = vmatpush.msra.mxu0 %v233
  %266 = vmatpush.msra.mxu0 %v232
  %267 = vmatmul.f32.gmra.mxu0 %v249
  %v268 = vpop.f32.mrf.mxu0
  %v269 = vadd.f32 %v245, %v268
  %270 = vdwg.mxu0
  %271 = vst [vmem:[%s5] sm:$0x3] %v269
  // Predicated region
  $region22: #{interpolator_forward.1} parent=0 // pred_check
    _
  $region23: #{interpolator_forward.1} parent=0 // pred_check_branch
    %273 = sbr.rel (0) target = $region25
  $region24: #{interpolator_forward.1} parent=0 // pred_region
    _
  $region25: #{interpolator_forward.1} parent=0 // pred_fallthru
    _
  // Predicated region
  $region26: #{interpolator_forward.1} parent=0 // pred_check
    _
  $region27: #{interpolator_forward.1} parent=0 // pred_check_branch
    %275 = sbr.rel (0) target = $region29
  $region28: #{interpolator_forward.1} parent=0 // pred_region
    _
  $region29: #{interpolator_forward.1} parent=0 // pred_fallthru
    _

</llo_original>
